<compile_context>
chip_gen: v5e
topology: v5e:2x2
jax: 0.10.0
libtpu: 0.0.40
codegen_flags: <defaults>
</compile_context>

<pallas_src>
import functools

import jax
import jax.numpy as jnp
from jax.experimental import pallas as pl
from jax.experimental.pallas import tpu as pltpu

BN_EPS = 1e-5


def _pick_t_tile(t: int) -> int:
    """Largest multiple-of-128 divisor of t (capped at 512), else full extent.

    The (8,128) rule: the last block dim must be a multiple of 128 or equal the
    full array dim.  Cap at 512 so 2x double-buffered in/out tiles stay far
    below the scoped VMEM default on every TPU generation.
    """
    if t % 128 == 0:
        for cand in (512, 384, 256, 128):
            if t % cand == 0:
                return cand
    return t


def _stats_kernel(x_ref, w_ref, mean_ref, rstd_ref, sum_acc, sq_acc, *, inv_m):
    # x_ref: (C_in, TT)   w_ref: (C_out, C_in)
    # mean_ref / rstd_ref: (C_out, 1) outputs (written once, on the last step)
    # sum_acc / sq_acc:    (C_out, 1) f32 VMEM scratch accumulators
    n_i = pl.program_id(0)
    t_i = pl.program_id(1)

    @pl.when(jnp.logical_and(n_i == 0, t_i == 0))
    def _init():
        sum_acc[...] = jnp.zeros_like(sum_acc)
        sq_acc[...] = jnp.zeros_like(sq_acc)

    # 1x1 Conv1d == per-channel matmul.  Feed native-dtype operands (bf16 stays
    # bf16 on the MXU); accumulate in f32.
    y = jnp.dot(w_ref[...], x_ref[...], preferred_element_type=jnp.float32)

    sum_acc[...] += jnp.sum(y, axis=1, keepdims=True)
    sq_acc[...] += jnp.sum(y * y, axis=1, keepdims=True)

    is_last = jnp.logical_and(
        n_i == pl.num_programs(0) - 1, t_i == pl.num_programs(1) - 1
    )

    @pl.when(is_last)
    def _finalize():
        mean = sum_acc[...] * inv_m
        var = jnp.maximum(sq_acc[...] * inv_m - mean * mean, 0.0)
        mean_ref[...] = mean
        rstd_ref[...] = jax.lax.rsqrt(var + BN_EPS)


def _normalize_kernel(x_ref, w_ref, mean_ref, rstd_ref, o_ref):
    # x_ref: (C_in, TT)  w_ref: (C_out, C_in)  mean/rstd: (C_out, 1)
    # o_ref: (C_out, TT)  -- lane axis is T, so stores stay lane-dense.
    y = jnp.dot(w_ref[...], x_ref[...], preferred_element_type=jnp.float32)
    o_ref[...] = ((y - mean_ref[...]) * rstd_ref[...]).astype(o_ref.dtype)


@jax.jit
def dense_layer_forward(x, w):
    """x: (N, C_in, T) or (N, C_in);  w: (C_out, C_in) (Conv1d weight, k=1)."""
    squeeze_last = x.ndim == 2
    if squeeze_last:  # matches torch's unsqueeze(-1) / squeeze(-1)
        x = x[:, :, None]

    n, c_in, t = x.shape
    c_out = w.shape[0]

    tt = _pick_t_tile(t)
    t_blocks = t // tt
    inv_m = 1.0 / float(n * t)  # biased (training-mode) BN statistics

    # Index the native NCT layout directly; leading N dim is squeezed out of
    # the kernel view.
    x_spec = pl.BlockSpec((None, c_in, tt), lambda i, j: (i, 0, j))
    w_spec = pl.BlockSpec((c_out, c_in), lambda i, j: (0, 0))
    stat_spec = pl.BlockSpec((c_out, 1), lambda i, j: (0, 0))

    # --- phase 1: per-channel batch statistics (sequential accumulation) ---
    mean, rstd = pl.pallas_call(
        functools.partial(_stats_kernel, inv_m=inv_m),
        out_shape=(
            jax.ShapeDtypeStruct((c_out, 1), jnp.float32),
            jax.ShapeDtypeStruct((c_out, 1), jnp.float32),
        ),
        grid=(n, t_blocks),
        in_specs=[x_spec, w_spec],
        out_specs=(stat_spec, stat_spec),
        scratch_shapes=[
            pltpu.VMEM((c_out, 1), jnp.float32),
            pltpu.VMEM((c_out, 1), jnp.float32),
        ],
        compiler_params=pltpu.CompilerParams(
            dimension_semantics=("arbitrary", "arbitrary")
        ),
    )(x, w)

    # --- phase 2: recompute Y per tile and normalize (fully parallel) ---
    out = pl.pallas_call(
        _normalize_kernel,
        out_shape=jax.ShapeDtypeStruct((n, c_out, t), x.dtype),
        grid=(n, t_blocks),
        in_specs=[x_spec, w_spec, stat_spec, stat_spec],
        out_specs=pl.BlockSpec((None, c_out, tt), lambda i, j: (i, 0, j)),
        compiler_params=pltpu.CompilerParams(
            dimension_semantics=("parallel", "parallel")
        ),
    )(x, w, mean, rstd)

    if squeeze_last:
        out = out[:, :, 0]
    return out


def _reference_forward(x, w):
    """Pure-JAX reference mirroring the torch module in training mode."""
    squeeze_last = x.ndim == 2
    if squeeze_last:
        x = x[:, :, None]
    y = jnp.einsum("oc,nct->not", w, x)
    mean = jnp.mean(y, axis=(0, 2), keepdims=True)
    var = jnp.mean((y - mean) ** 2, axis=(0, 2), keepdims=True)
    y = (y - mean) / jnp.sqrt(var + BN_EPS)
    if squeeze_last:
        y = y[:, :, 0]
    return y


if __name__ == "__main__":
    key = jax.random.PRNGKey(0)
    k_x, k_w = jax.random.split(key)

    batch, in_channels, out_channels, seq = 2, 4, 8, 16

    x = jax.random.normal(k_x, (batch, in_channels, seq), dtype=jnp.float32)
    # Conv1d weight (C_out, C_in, 1) with the trailing k dim squeezed.
    w = jax.random.normal(k_w, (out_channels, in_channels), dtype=jnp.float32)
    w = w * (1.0 / jnp.sqrt(jnp.float32(in_channels)))

    out = dense_layer_forward(x, w)
    out = jax.block_until_ready(out)

    ref = _reference_forward(x, w)
    assert out.shape == (batch, out_channels, seq)
    assert jnp.allclose(out, ref, atol=1e-4, rtol=1e-4), (
        float(jnp.max(jnp.abs(out - ref)))
    )

    # TODO(synk): BatchNorm1d running-mean/var (momentum) side-effect update is
    # not reproduced; only the training-mode forward output is computed.
    print("KERNEL_OK")
</pallas_src>

<mosaic_0001>
module attributes {stable_mosaic.version = 11 : i64} {
  func.func @_normalize_kernel(%arg0: i32, %arg1: i32, %arg2: memref<1x4x16xf32, #tpu.memory_space<vmem>>, %arg3: memref<8x4xf32, #tpu.memory_space<vmem>>, %arg4: memref<8x1xf32, #tpu.memory_space<vmem>>, %arg5: memref<8x1xf32, #tpu.memory_space<vmem>>, %arg6: memref<1x8x16xf32, #tpu.memory_space<vmem>>) attributes {dimension_semantics = [#tpu.dimension_semantics<parallel>, #tpu.dimension_semantics<parallel>], iteration_bounds = array<i64: 2, 1>, scalar_prefetch = 0 : i64, scratch_operands = 0 : i64, tpu.core_type = #tpu.core_type<tc>, window_params = [{transform_indices = @transform_0, window_bounds = array<i64: 1, 4, 16>}, {pipeline_mode = #tpu.pipeline_mode<synchronous>, transform_indices = @transform_1, window_bounds = array<i64: 8, 4>}, {pipeline_mode = #tpu.pipeline_mode<synchronous>, transform_indices = @transform_2, window_bounds = array<i64: 8, 1>}, {pipeline_mode = #tpu.pipeline_mode<synchronous>, transform_indices = @transform_3, window_bounds = array<i64: 8, 1>}, {transform_indices = @transform_4, window_bounds = array<i64: 1, 8, 16>}]} {
    %c0 = arith.constant 0 : index
    %c0_0 = arith.constant 0 : index
    %0 = vector.load %arg3[%c0, %c0_0] : memref<8x4xf32, #tpu.memory_space<vmem>>, vector<8x4xf32>
    %c0_1 = arith.constant 0 : index
    %c0_2 = arith.constant 0 : index
    %c0_3 = arith.constant 0 : index
    %1 = vector.load %arg2[%c0_1, %c0_2, %c0_3] : memref<1x4x16xf32, #tpu.memory_space<vmem>>, vector<1x4x16xf32>
    %2 = vector.shape_cast %1 : vector<1x4x16xf32> to vector<4x16xf32>
    %cst = arith.constant dense<0.000000e+00> : vector<8x16xf32>
    %3 = tpu.matmul %0, %2, %cst {dimension_numbers = #tpu.dot_dimension_numbers<[1], [0], [0], [1], [0, 0, 1, 1], [], []>} : vector<8x4xf32>, vector<4x16xf32>, vector<8x16xf32> -> vector<8x16xf32>
    %c0_4 = arith.constant 0 : index
    %c0_5 = arith.constant 0 : index
    %4 = vector.load %arg4[%c0_4, %c0_5] : memref<8x1xf32, #tpu.memory_space<vmem>>, vector<8x1xf32>
    %5 = vector.broadcast %4 : vector<8x1xf32> to vector<8x16xf32>
    %6 = arith.subf %3, %5 : vector<8x16xf32>
    %c0_6 = arith.constant 0 : index
    %c0_7 = arith.constant 0 : index
    %7 = vector.load %arg5[%c0_6, %c0_7] : memref<8x1xf32, #tpu.memory_space<vmem>>, vector<8x1xf32>
    %8 = vector.broadcast %7 : vector<8x1xf32> to vector<8x16xf32>
    %9 = arith.mulf %6, %8 : vector<8x16xf32>
    %c0_8 = arith.constant 0 : index
    %c0_9 = arith.constant 0 : index
    %c0_10 = arith.constant 0 : index
    %10 = vector.load %arg6[%c0_8, %c0_9, %c0_10] : memref<1x8x16xf32, #tpu.memory_space<vmem>>, vector<1x8x16xf32>
    %11 = vector.shape_cast %10 : vector<1x8x16xf32> to vector<8x16xf32>
    %12 = vector.shape_cast %9 : vector<8x16xf32> to vector<1x8x16xf32>
    tpu.vector_store %arg6[%c0_8, %c0_9, %c0_10], %12 {strides = array<i32>} : memref<1x8x16xf32, #tpu.memory_space<vmem>>, vector<1x8x16xf32>,
    return
  }
  func.func @transform_0(%arg0: i32, %arg1: i32) -> (i32, i32, i32) {
    %c0_i32 = arith.constant 0 : i32
    %c0_i32_0 = arith.constant 0 : i32
    return %arg0, %c0_i32, %arg1 : i32, i32, i32
  }
  func.func @transform_1(%arg0: i32, %arg1: i32) -> (i32, i32) {
    %c0_i32 = arith.constant 0 : i32
    %c0_i32_0 = arith.constant 0 : i32
    %c0_i32_1 = arith.constant 0 : i32
    return %c0_i32, %c0_i32_0 : i32, i32
  }
  func.func @transform_2(%arg0: i32, %arg1: i32) -> (i32, i32) {
    %c0_i32 = arith.constant 0 : i32
    %c0_i32_0 = arith.constant 0 : i32
    %c0_i32_1 = arith.constant 0 : i32
    return %c0_i32, %c0_i32_0 : i32, i32
  }
  func.func @transform_3(%arg0: i32, %arg1: i32) -> (i32, i32) {
    %c0_i32 = arith.constant 0 : i32
    %c0_i32_0 = arith.constant 0 : i32
    %c0_i32_1 = arith.constant 0 : i32
    return %c0_i32, %c0_i32_0 : i32, i32
  }
  func.func @transform_4(%arg0: i32, %arg1: i32) -> (i32, i32, i32) {
    %c0_i32 = arith.constant 0 : i32
    %c0_i32_0 = arith.constant 0 : i32
    return %arg0, %c0_i32, %arg1 : i32, i32, i32
  }
}

module attributes {stable_mosaic.version = 11 : i64} {
  func.func @_stats_kernel(%arg0: i32, %arg1: i32, %arg2: memref<1x4x16xf32, #tpu.memory_space<vmem>>, %arg3: memref<8x4xf32, #tpu.memory_space<vmem>>, %arg4: memref<8x1xf32, #tpu.memory_space<vmem>>, %arg5: memref<8x1xf32, #tpu.memory_space<vmem>>, %arg6: memref<8x1xf32, #tpu.memory_space<vmem>>, %arg7: memref<8x1xf32, #tpu.memory_space<vmem>>) attributes {dimension_semantics = [#tpu.dimension_semantics<arbitrary>, #tpu.dimension_semantics<arbitrary>], iteration_bounds = array<i64: 2, 1>, scalar_prefetch = 0 : i64, scratch_operands = 2 : i64, tpu.core_type = #tpu.core_type<tc>, window_params = [{transform_indices = @transform_0, window_bounds = array<i64: 1, 4, 16>}, {pipeline_mode = #tpu.pipeline_mode<synchronous>, transform_indices = @transform_1, window_bounds = array<i64: 8, 4>}, {pipeline_mode = #tpu.pipeline_mode<synchronous>, transform_indices = @transform_2, window_bounds = array<i64: 8, 1>}, {pipeline_mode = #tpu.pipeline_mode<synchronous>, transform_indices = @transform_3, window_bounds = array<i64: 8, 1>}]} {
    %c0_i32 = arith.constant 0 : i32
    %0 = arith.cmpi eq, %arg0, %c0_i32 : i32
    %c0_i32_0 = arith.constant 0 : i32
    %1 = arith.cmpi eq, %arg1, %c0_i32_0 : i32
    %2 = arith.andi %0, %1 : i1
    %3 = arith.extui %2 : i1 to i32
    %c0_i32_1 = arith.constant 0 : i32
    %4 = arith.cmpi ne, %3, %c0_i32_1 : i32
    scf.if %4 {
      %cst_18 = arith.constant 0.000000e+00 : f32
      %25 = vector.broadcast %cst_18 : f32 to vector<8x1xf32>
      %c0_19 = arith.constant 0 : index
      %c0_20 = arith.constant 0 : index
      %26 = vector.load %arg6[%c0_19, %c0_20] : memref<8x1xf32, #tpu.memory_space<vmem>>, vector<8x1xf32>
      tpu.vector_store %arg6[%c0_19, %c0_20], %25 {strides = array<i32>} : memref<8x1xf32, #tpu.memory_space<vmem>>, vector<8x1xf32>,
      %cst_21 = arith.constant 0.000000e+00 : f32
      %27 = vector.broadcast %cst_21 : f32 to vector<8x1xf32>
      %c0_22 = arith.constant 0 : index
      %c0_23 = arith.constant 0 : index
      %28 = vector.load %arg7[%c0_22, %c0_23] : memref<8x1xf32, #tpu.memory_space<vmem>>, vector<8x1xf32>
      tpu.vector_store %arg7[%c0_22, %c0_23], %27 {strides = array<i32>} : memref<8x1xf32, #tpu.memory_space<vmem>>, vector<8x1xf32>,
    } else {
    }
    %c0 = arith.constant 0 : index
    %c0_2 = arith.constant 0 : index
    %5 = vector.load %arg3[%c0, %c0_2] : memref<8x4xf32, #tpu.memory_space<vmem>>, vector<8x4xf32>
    %c0_3 = arith.constant 0 : index
    %c0_4 = arith.constant 0 : index
    %c0_5 = arith.constant 0 : index
    %6 = vector.load %arg2[%c0_3, %c0_4, %c0_5] : memref<1x4x16xf32, #tpu.memory_space<vmem>>, vector<1x4x16xf32>
    %7 = vector.shape_cast %6 : vector<1x4x16xf32> to vector<4x16xf32>
    %cst = arith.constant dense<0.000000e+00> : vector<8x16xf32>
    %8 = tpu.matmul %5, %7, %cst {dimension_numbers = #tpu.dot_dimension_numbers<[1], [0], [0], [1], [0, 0, 1, 1], [], []>} : vector<8x4xf32>, vector<4x16xf32>, vector<8x16xf32> -> vector<8x16xf32>
    %c0_6 = arith.constant 0 : index
    %c0_7 = arith.constant 0 : index
    %9 = vector.load %arg6[%c0_6, %c0_7] : memref<8x1xf32, #tpu.memory_space<vmem>>, vector<8x1xf32>
    %cst_8 = arith.constant dense<0.000000e+00> : vector<8xf32>
    %10 = vector.multi_reduction <add>, %8, %cst_8 [1] : vector<8x16xf32> to vector<8xf32>
    %11 = vector.shape_cast %10 : vector<8xf32> to vector<8x1xf32>
    %12 = arith.addf %9, %11 : vector<8x1xf32>
    %c0_9 = arith.constant 0 : index
    %c0_10 = arith.constant 0 : index
    %13 = vector.load %arg6[%c0_9, %c0_10] : memref<8x1xf32, #tpu.memory_space<vmem>>, vector<8x1xf32>
    tpu.vector_store %arg6[%c0_9, %c0_10], %12 {strides = array<i32>} : memref<8x1xf32, #tpu.memory_space<vmem>>, vector<8x1xf32>,
    %c0_11 = arith.constant 0 : index
    %c0_12 = arith.constant 0 : index
    %14 = vector.load %arg7[%c0_11, %c0_12] : memref<8x1xf32, #tpu.memory_space<vmem>>, vector<8x1xf32>
    %15 = arith.mulf %8, %8 : vector<8x16xf32>
    %cst_13 = arith.constant dense<0.000000e+00> : vector<8xf32>
    %16 = vector.multi_reduction <add>, %15, %cst_13 [1] : vector<8x16xf32> to vector<8xf32>
    %17 = vector.shape_cast %16 : vector<8xf32> to vector<8x1xf32>
    %18 = arith.addf %14, %17 : vector<8x1xf32>
    %c0_14 = arith.constant 0 : index
    %c0_15 = arith.constant 0 : index
    %19 = vector.load %arg7[%c0_14, %c0_15] : memref<8x1xf32, #tpu.memory_space<vmem>>, vector<8x1xf32>
    tpu.vector_store %arg7[%c0_14, %c0_15], %18 {strides = array<i32>} : memref<8x1xf32, #tpu.memory_space<vmem>>, vector<8x1xf32>,
    %c1_i32 = arith.constant 1 : i32
    %20 = arith.cmpi eq, %arg0, %c1_i32 : i32
    %c0_i32_16 = arith.constant 0 : i32
    %21 = arith.cmpi eq, %arg1, %c0_i32_16 : i32
    %22 = arith.andi %20, %21 : i1
    %23 = arith.extui %22 : i1 to i32
    %c0_i32_17 = arith.constant 0 : i32
    %24 = arith.cmpi ne, %23, %c0_i32_17 : i32
    scf.if %24 {
      %c0_18 = arith.constant 0 : index
      %c0_19 = arith.constant 0 : index
      %25 = vector.load %arg6[%c0_18, %c0_19] : memref<8x1xf32, #tpu.memory_space<vmem>>, vector<8x1xf32>
      %cst_20 = arith.constant 3.125000e-02 : f32
      %26 = vector.broadcast %cst_20 : f32 to vector<8x1xf32>
      %27 = arith.mulf %25, %26 : vector<8x1xf32>
      %c0_21 = arith.constant 0 : index
      %c0_22 = arith.constant 0 : index
      %28 = vector.load %arg7[%c0_21, %c0_22] : memref<8x1xf32, #tpu.memory_space<vmem>>, vector<8x1xf32>
      %cst_23 = arith.constant 3.125000e-02 : f32
      %29 = vector.broadcast %cst_23 : f32 to vector<8x1xf32>
      %30 = arith.mulf %28, %29 : vector<8x1xf32>
      %31 = arith.mulf %27, %27 : vector<8x1xf32>
      %32 = arith.subf %30, %31 : vector<8x1xf32>
      %cst_24 = arith.constant 0.000000e+00 : f32
      %33 = vector.broadcast %cst_24 : f32 to vector<8x1xf32>
      %34 = arith.maximumf %32, %33 : vector<8x1xf32>
      %c0_25 = arith.constant 0 : index
      %c0_26 = arith.constant 0 : index
      %35 = vector.load %arg4[%c0_25, %c0_26] : memref<8x1xf32, #tpu.memory_space<vmem>>, vector<8x1xf32>
      tpu.vector_store %arg4[%c0_25, %c0_26], %27 {strides = array<i32>} : memref<8x1xf32, #tpu.memory_space<vmem>>, vector<8x1xf32>,
      %cst_27 = arith.constant 9.99999974E-6 : f32
      %36 = vector.broadcast %cst_27 : f32 to vector<8x1xf32>
      %37 = arith.addf %34, %36 : vector<8x1xf32>
      %38 = math.rsqrt %37 : vector<8x1xf32>
      %c0_28 = arith.constant 0 : index
      %c0_29 = arith.constant 0 : index
      %39 = vector.load %arg5[%c0_28, %c0_29] : memref<8x1xf32, #tpu.memory_space<vmem>>, vector<8x1xf32>
      tpu.vector_store %arg5[%c0_28, %c0_29], %38 {strides = array<i32>} : memref<8x1xf32, #tpu.memory_space<vmem>>, vector<8x1xf32>,
    } else {
    }
    return
  }
  func.func @transform_0(%arg0: i32, %arg1: i32) -> (i32, i32, i32) {
    %c0_i32 = arith.constant 0 : i32
    %c0_i32_0 = arith.constant 0 : i32
    return %arg0, %c0_i32, %arg1 : i32, i32, i32
  }
  func.func @transform_1(%arg0: i32, %arg1: i32) -> (i32, i32) {
    %c0_i32 = arith.constant 0 : i32
    %c0_i32_0 = arith.constant 0 : i32
    %c0_i32_1 = arith.constant 0 : i32
    return %c0_i32, %c0_i32_0 : i32, i32
  }
  func.func @transform_2(%arg0: i32, %arg1: i32) -> (i32, i32) {
    %c0_i32 = arith.constant 0 : i32
    %c0_i32_0 = arith.constant 0 : i32
    %c0_i32_1 = arith.constant 0 : i32
    return %c0_i32, %c0_i32_0 : i32, i32
  }
  func.func @transform_3(%arg0: i32, %arg1: i32) -> (i32, i32) {
    %c0_i32 = arith.constant 0 : i32
    %c0_i32_0 = arith.constant 0 : i32
    %c0_i32_1 = arith.constant 0 : i32
    return %c0_i32, %c0_i32_0 : i32, i32
  }
}

</mosaic_0001>

<llo_original>
// kernel: dense_layer_forward.3
$region0: #{dense_layer_forward.3}
  #allocation0 [shape = 'u32[]', space=smem, size = 0x4, offset = 0x4, fixed_abs, tag = 'smem constant byte address 0x4 - core index']
  #allocation1 [shape = 'u32[72,128]{1,0:T(1,128)}', space=vmem, size = 0x9000, scoped, tag = 'internal scratch']
  %s0 = inlined_call_operand.vmem [shape: f32[2,4,16], index: 0, kind: input, shape index: {}]
  %s1 = inlined_call_operand.vmem [shape: f32[8,4], index: 1, kind: input, shape index: {}]
  %s2 = inlined_call_operand.vmem [shape: f32[8,1], index: 2, kind: input, shape index: {}]
  %s3 = inlined_call_operand.vmem [shape: f32[8,1], index: 3, kind: input, shape index: {}]
  %s4 = inlined_call_operand.hbm [shape: f32[2,8,16], index: 4, kind: output, shape index: {}]
  %s5 = sld [smem:[#allocation0]]
  $region49: #{dense_layer_forward.3} parent=0
    _
  %s7 = ssub.s32 1, %s5
  %s8 = scalar_select 0, %s7, %s5
  $region1: #{dense_layer_forward.3} parent=0
    #allocation2 [shape = 'u8[8192]{0}', space=vmem, size = 0x2000, scoped, tag = 'output window, operand 0']
    #allocation3 [shape = 's32[2]{0}', space=sflag, size = 0x8, scoped, tag = 'scoped memory for dense_layer_forward.3']
    %9 = vsyncpa [#allocation3], 0
    %s10 = scalar_lea.sflag [#allocation3], 1
    %11 = vsyncpa %s10, 0
    loop: start=0, step=1, limit=4
    $region2: #{dense_layer_forward.3} parent=1 // loop_pre_header
      _
    $region3: #{dense_layer_forward.3} parent=1 // loop_header
      %s13 = sphi 0, %s17
      %p14 = scmp.ge.s32.totalorder %s13, 4
      %s20 = sphi 0, %s32
      %s21 = sphi 0, %s28
      %s22 = sphi 0, %s20
      %s23 = sphi 0, %s21
      %s24 = sphi 0, %s22
      %s25 = sphi 0, %s23
      %s37 = sphi 0, %s39
      %s40 = sphi 0, %s37
      %s41 = sphi 0, %s40
      %s57 = sphi 0, %s41
      %s61 = sphi 0, %s61
      %s63 = sphi 0, %s61
      %s64 = sphi 0, %s63
      %s78 = sphi 0, %s64
      %s82 = sphi 0, %s82
      %s84 = sphi 0, %s82
      %s85 = sphi 0, %s84
      %s99 = sphi 0, %s85
      %s103 = sphi 0, %s103
      %s105 = sphi 0, %s103
      %s106 = sphi 0, %s105
      %s120 = sphi 0, %s106
      %s128 = sphi 0, %s130
      %s131 = sphi 0, %s128
      %s132 = sphi 0, %s131
      %s148 = sphi 0, %s132
    $region4: #{dense_layer_forward.3} parent=1 // loop_header_branch
      %16 = sbr.rel (%p14) target = $region8
    $region5: #{dense_layer_forward.3} parent=1 // loop_body
      %s18 = ssub.s32 %s13, 1
      %s19 = ssub.s32 %s13, 2
      %s26 = sadd.s32 1, %s21
      %p27 = scmp.ge.s32.totalorder %s26, 1
      %s28 = scalar_select %p27, 0, %s26
      %s29 = sadd.s32 1, %s20
      %s30 = scalar_select %p27, %s29, %s20
      %p31 = scmp.ge.s32.totalorder %s30, 2
      %s32 = scalar_select %p31, 0, %s30
      %s33 = ssub.s32 %s20, %s32
      %s34 = ssub.s32 %s21, %s28
      %s35 = sor.u32 %s33, %s34
      %p36 = scmp.eq.s32.totalorder %s35, 0
      %s38 = sadd.s32 %s37, 1
      %s39 = scalar_select %p36, %s37, %s38
      %p42 = pneg %p36
      %p43 = scmp.eq.s32.totalorder %s13, 1
      %p44 = por %p42, %p43
      %p45 = scmp.ne.s32.totalorder %s37, %s40
      %p46 = scmp.eq.s32.totalorder %s13, 0
      %p47 = por %p45, %p46
      %p48 = scmp.ne.s32.totalorder %s37, %s40
      %p49 = scmp.eq.s32.totalorder %s18, 1
      %p50 = por %p48, %p49
      %p51 = scmp.ne.s32.totalorder %s40, %s41
      %p52 = scmp.eq.s32.totalorder %s18, 0
      %p53 = por %p51, %p52
      %p54 = scmp.ne.s32.totalorder %s40, %s41
      %p55 = scmp.eq.s32.totalorder %s19, 1
      %p56 = por %p54, %p55
      %p58 = scmp.ne.s32.totalorder %s41, %s57
      %p59 = scmp.eq.s32.totalorder %s19, 0
      %p60 = por %p58, %p59
      %s62 = sadd.s32 %s61, 1
      %p65 = scmp.eq.s32.totalorder %s13, 1
      %p66 = scmp.ne.s32.totalorder %s61, %s63
      %p67 = scmp.eq.s32.totalorder %s13, 0
      %p68 = por %p66, %p67
      %p69 = scmp.ne.s32.totalorder %s61, %s63
      %p70 = scmp.eq.s32.totalorder %s18, 1
      %p71 = por %p69, %p70
      %p72 = scmp.ne.s32.totalorder %s63, %s64
      %p73 = scmp.eq.s32.totalorder %s18, 0
      %p74 = por %p72, %p73
      %p75 = scmp.ne.s32.totalorder %s63, %s64
      %p76 = scmp.eq.s32.totalorder %s19, 1
      %p77 = por %p75, %p76
      %p79 = scmp.ne.s32.totalorder %s64, %s78
      %p80 = scmp.eq.s32.totalorder %s19, 0
      %p81 = por %p79, %p80
      %s83 = sadd.s32 %s82, 1
      %p86 = scmp.eq.s32.totalorder %s13, 1
      %p87 = scmp.ne.s32.totalorder %s82, %s84
      %p88 = scmp.eq.s32.totalorder %s13, 0
      %p89 = por %p87, %p88
      %p90 = scmp.ne.s32.totalorder %s82, %s84
      %p91 = scmp.eq.s32.totalorder %s18, 1
      %p92 = por %p90, %p91
      %p93 = scmp.ne.s32.totalorder %s84, %s85
      %p94 = scmp.eq.s32.totalorder %s18, 0
      %p95 = por %p93, %p94
      %p96 = scmp.ne.s32.totalorder %s84, %s85
      %p97 = scmp.eq.s32.totalorder %s19, 1
      %p98 = por %p96, %p97
      %p100 = scmp.ne.s32.totalorder %s85, %s99
      %p101 = scmp.eq.s32.totalorder %s19, 0
      %p102 = por %p100, %p101
      %s104 = sadd.s32 %s103, 1
      %p107 = scmp.eq.s32.totalorder %s13, 1
      %p108 = scmp.ne.s32.totalorder %s103, %s105
      %p109 = scmp.eq.s32.totalorder %s13, 0
      %p110 = por %p108, %p109
      %p111 = scmp.ne.s32.totalorder %s103, %s105
      %p112 = scmp.eq.s32.totalorder %s18, 1
      %p113 = por %p111, %p112
      %p114 = scmp.ne.s32.totalorder %s105, %s106
      %p115 = scmp.eq.s32.totalorder %s18, 0
      %p116 = por %p114, %p115
      %p117 = scmp.ne.s32.totalorder %s105, %s106
      %p118 = scmp.eq.s32.totalorder %s19, 1
      %p119 = por %p117, %p118
      %p121 = scmp.ne.s32.totalorder %s106, %s120
      %p122 = scmp.eq.s32.totalorder %s19, 0
      %p123 = por %p121, %p122
      %s124 = ssub.s32 %s20, %s32
      %s125 = ssub.s32 %s21, %s28
      %s126 = sor.u32 %s124, %s125
      %p127 = scmp.eq.s32.totalorder %s126, 0
      %s129 = sadd.s32 %s128, 1
      %s130 = scalar_select %p127, %s128, %s129
      %p133 = pneg %p127
      %p134 = scmp.eq.s32.totalorder %s13, 1
      %p135 = por %p133, %p134
      %p136 = scmp.ne.s32.totalorder %s128, %s131
      %p137 = scmp.eq.s32.totalorder %s13, 0
      %p138 = por %p136, %p137
      %p139 = scmp.ne.s32.totalorder %s128, %s131
      %p140 = scmp.eq.s32.totalorder %s18, 1
      %p141 = por %p139, %p140
      %p142 = scmp.ne.s32.totalorder %s131, %s132
      %p143 = scmp.eq.s32.totalorder %s18, 0
      %p144 = por %p142, %p143
      %p145 = scmp.ne.s32.totalorder %s131, %s132
      %p146 = scmp.eq.s32.totalorder %s19, 1
      %p147 = por %p145, %p146
      %p149 = scmp.ne.s32.totalorder %s132, %s148
      %p150 = scmp.eq.s32.totalorder %s19, 0
      %p151 = por %p149, %p150
      %p152 = scmp.le.s32.totalorder 1, %s13
      %p153 = scmp.lt.s32.totalorder %s13, 3
      %p154 = pnand %p152, %p153
      %p155 = pneg %p154
      // Predicated region
      $region9: #{dense_layer_forward.3} parent=5 // pred_check
        _
      $region10: #{dense_layer_forward.3} parent=5 // pred_check_branch
        %157 = sbr.rel (%p154) target = $region12
      $region11: #{dense_layer_forward.3} parent=5 // pred_region
        %s158 = ssub.s32 %s13, 1
        // Predicated region
        $region13: #{dense_layer_forward.3} parent=11 // pred_check
          %p159 = pneg %p74
        $region14: #{dense_layer_forward.3} parent=11 // pred_check_branch
          %161 = sbr.rel (%p159) target = $region16
        $region15: #{dense_layer_forward.3} parent=11 // pred_region
          _
        $region16: #{dense_layer_forward.3} parent=11 // pred_fallthru
          _
        // Predicated region
        $region17: #{dense_layer_forward.3} parent=11 // pred_check
          %p162 = pneg %p95
        $region18: #{dense_layer_forward.3} parent=11 // pred_check_branch
          %164 = sbr.rel (%p162) target = $region20
        $region19: #{dense_layer_forward.3} parent=11 // pred_region
          _
        $region20: #{dense_layer_forward.3} parent=11 // pred_fallthru
          _
        // Predicated region
        $region21: #{dense_layer_forward.3} parent=11 // pred_check
          %p165 = pneg %p116
        $region22: #{dense_layer_forward.3} parent=11 // pred_check_branch
          %167 = sbr.rel (%p165) target = $region24
        $region23: #{dense_layer_forward.3} parent=11 // pred_region
          _
        $region24: #{dense_layer_forward.3} parent=11 // pred_fallthru
          _
      $region12: #{dense_layer_forward.3} parent=5 // pred_fallthru
        _
      %p168 = scmp.lt.s32.totalorder %s13, 2
      // Predicated region
      $region25: #{dense_layer_forward.3} parent=5 // pred_check
        %p169 = pneg %p168
      $region26: #{dense_layer_forward.3} parent=5 // pred_check_branch
        %171 = sbr.rel (%p169) target = $region28
      $region27: #{dense_layer_forward.3} parent=5 // pred_region
        // Predicated region
        $region29: #{dense_layer_forward.3} parent=27 // pred_check
          %p172 = pneg %p47
        $region30: #{dense_layer_forward.3} parent=27 // pred_check_branch
          %174 = sbr.rel (%p172) target = $region32
        $region31: #{dense_layer_forward.3} parent=27 // pred_region
          %p175 = scmp.lt.s32.totalorder %s20, 1
          %s176 = scalar_select %p175, %s20, 1
          %p177 = scmp.lt.s32.totalorder %s21, 0
          %s178 = scalar_select %p177, %s21, 0
          %s179 = sadd.s32 %s178, %s176
          %s180 = smul.addr %s179, 4
          %s181 = scalar_lea.vmem %s0, %s180
        $region32: #{dense_layer_forward.3} parent=27 // pred_fallthru
          _
      $region28: #{dense_layer_forward.3} parent=5 // pred_fallthru
        _
      %p182 = scmp.le.s32.totalorder 1, %s13
      %p183 = scmp.lt.s32.totalorder %s13, 3
      %p184 = pnand %p182, %p183
      %p185 = pneg %p184
      // Predicated region
      $region33: #{dense_layer_forward.3} parent=5 // pred_check
        _
      $region34: #{dense_layer_forward.3} parent=5 // pred_check_branch
        %187 = sbr.rel (%p184) target = $region36
      $region35: #{dense_layer_forward.3} parent=5 // pred_region
        %s188 = ssub.s32 %s13, 1
        %p189 = scmp.lt.s32.totalorder %s22, 1
        %s190 = scalar_select %p189, %s22, 1
        %p191 = scmp.lt.s32.totalorder %s23, 0
        %s192 = scalar_select %p191, %s23, 0
        %s193 = sadd.s32 %s192, %s190
        %s194 = smul.addr %s193, 4
        %s195 = scalar_lea.vmem %s0, %s194
        %p196 = pneg %p53
        %p197 = pneg %p50
        %p198 = pneg %p74
        %p199 = pneg %p71
        %p200 = pneg %p95
        %p201 = pneg %p92
        %p202 = pneg %p116
        %p203 = pneg %p113
        %p204 = pneg %p144
        %p205 = pneg %p141
        %s206 = sand.u32 %s131, 1
        %s207 = scalar_lea.sflag [#allocation3], %s206
        %s208 = sand.u32 %s131, 1
        %s209 = smul.addr %s208, 8
        %s210 = scalar_lea.vmem [#allocation2], %s209
        %p211 = scmp.lt.s32.totalorder %s22, 1
        %s212 = scalar_select %p211, %s22, 1
        %p213 = scmp.lt.s32.totalorder %s23, 0
        %s214 = scalar_select %p213, %s23, 0
        %s215 = sadd.s32 %s214, %s212
        %s216 = smul.addr %s215, 4
        %s217 = scalar_lea.vmem %s0, %s216
        %v218 = vld [vmem:[%s1] sm:$0xff]
        %v219 = vld [vmem:[%s217] sm:$0xf]
        %vm220 = vcmask 31744
        %v222 = vsel %vm220, %v218, 0
        %vm224 = vcmask 1043456
        %v226 = vsel %vm224, %v219, 0
        %228 = vmatpush.msra.mxu0 0.0
        %229 = vmatpush.msra.mxu0 0.0
        %230 = vmatpush.msra.mxu0 0.0
        %231 = vmatpush.msra.mxu0 0.0
        %232 = vmatpush.msra.mxu0 0.0
        %233 = vmatpush.msra.mxu0 0.0
        %234 = vmatpush.msra.mxu0 0.0
        %235 = vmatpush.msra.mxu0 0.0
        %236 = vmatpush.msra.mxu0 0.0
        %237 = vmatpush.msra.mxu0 0.0
        %238 = vmatpush.msra.mxu0 0.0
        %239 = vmatpush.msra.mxu0 0.0
        %240 = vmatpush.msra.mxu0 0.0
        %241 = vmatpush.msra.mxu0 0.0
        %242 = vmatpush.msra.mxu0 0.0
        %243 = vmatpush.msra.mxu0 %v226
        %244 = vmatmul.f32.gmra.mxu0 %v222
        %v245 = vpop.f32.mrf.mxu0
        %v246 = vadd.f32 0.0, %v245
        %247 = vdwg.mxu0
        %v248 = vld [vmem:[%s2] sm:$0xff]
        %250 = vset.pattern.permute.xlu0 0
        %251 = vperm.xlu0 %250, %v248
        %v252 = vpop.permute.xlu0 %251
        %v254 = vsub.f32 %v246, %v252
        %v255 = vld [vmem:[%s3] sm:$0xff]
        %257 = vset.pattern.permute.xlu0 0
        %258 = vperm.xlu0 %257, %v255
        %v259 = vpop.permute.xlu0 %258
        %v261 = vmul.f32 %v254, %v259
        %vm262 = vcmask 130048
        %263 = vst.msk [vmem:[%s210] sm:$0xff] %vm262, %v261
        %s264 = sand.u32 %s131, 1
        %s265 = scalar_lea.sflag [#allocation3], %s264
        %s266 = sand.u32 %s131, 1
        %s267 = smul.addr %s266, 8
        %s268 = scalar_lea.vmem [#allocation2], %s267
        // Predicated region
        $region37: #{dense_layer_forward.3} parent=35 // pred_check
          %p269 = pneg %p141
        $region38: #{dense_layer_forward.3} parent=35 // pred_check_branch
          %271 = sbr.rel (%p269) target = $region40
        $region39: #{dense_layer_forward.3} parent=35 // pred_region
          %273 = vsyncadd %s265, 0
          %s274 = sadd.s32 %s23, %s22
          %s275 = smul.addr %s274, 8
          %s276 = scalar_lea.hbm %s4, %s275
          %s278 = sshll.u32 %s268, 4
          %s279 = int_to_ptr.vmem [resolvable:$true] %s278
          %s280 = sshll.u32 %s276, 4
          %s281 = int_to_ptr.hbm [resolvable:$true] %s280
          %283 = dma.vmem_to_hbm [thread:$0]  %s279, 128, %s281, %s265
        $region40: #{dense_layer_forward.3} parent=35 // pred_fallthru
          _
      $region36: #{dense_layer_forward.3} parent=5 // pred_fallthru
        _
      %p284 = scmp.le.s32.totalorder 2, %s13
      // Predicated region
      $region41: #{dense_layer_forward.3} parent=5 // pred_check
        %p285 = pneg %p284
      $region42: #{dense_layer_forward.3} parent=5 // pred_check_branch
        %287 = sbr.rel (%p285) target = $region44
      $region43: #{dense_layer_forward.3} parent=5 // pred_region
        %s288 = ssub.s32 %s13, 2
        // Predicated region
        $region45: #{dense_layer_forward.3} parent=43 // pred_check
          %p289 = pneg %p147
        $region46: #{dense_layer_forward.3} parent=43 // pred_check_branch
          %291 = sbr.rel (%p289) target = $region48
        $region47: #{dense_layer_forward.3} parent=43 // pred_region
          %s292 = sand.u32 %s132, 1
          %s293 = scalar_lea.sflag [#allocation3], %s292
          %s294 = sand.u32 %s132, 1
          %s295 = smul.addr %s294, 8
          %s296 = scalar_lea.vmem [#allocation2], %s295
          %298 = dma.done %s293, 128
        $region48: #{dense_layer_forward.3} parent=43 // pred_fallthru
          _
      $region44: #{dense_layer_forward.3} parent=5 // pred_fallthru
        _
    $region6: #{dense_layer_forward.3} parent=1 // loop_footer
      %s17 = sadd.s32 1, %s13
    $region7: #{dense_layer_forward.3} parent=1 // loop_footer_branch
      %12 = sbr.rel target = $region3
    $region8: #{dense_layer_forward.3} parent=1 // loop_exit
      _
    %299 = vsyncpa [#allocation3], 1
    %s300 = scalar_lea.sflag [#allocation3], 1
    %301 = vsyncpa %s300, 1

// kernel: dense_layer_forward.2
$region0: #{dense_layer_forward.2}
  #allocation0 [shape = 'u32[]', space=smem, size = 0x4, offset = 0x4, fixed_abs, tag = 'smem constant byte address 0x4 - core index']
  #allocation1 [shape = 'u32[72,128]{1,0:T(1,128)}', space=vmem, size = 0x9000, scoped, tag = 'internal scratch']
  #allocation2 [shape = 'f32[8,1]{1,0:T(8,128)}', space=vmem, size = 0x1000, scoped, tag = 'scratch operand']
  #allocation3 [shape = 'f32[8,1]{1,0:T(8,128)}', space=vmem, size = 0x1000, scoped, tag = 'scratch operand']
  %s0 = inlined_call_operand.vmem [shape: f32[2,4,16], index: 0, kind: input, shape index: {}]
  %s1 = inlined_call_operand.vmem [shape: f32[8,4], index: 1, kind: input, shape index: {}]
  %s2 = inlined_call_operand.vmem [shape: f32[8,1], index: 2, kind: output, shape index: {0}]
  %s3 = inlined_call_operand.vmem [shape: f32[8,1], index: 3, kind: output, shape index: {1}]
  %4 = xla_tuple %s2, %s3
  %s5 = sld [smem:[#allocation0]]
  $region57: #{dense_layer_forward.2} parent=0
    _
  %s7 = ssub.s32 1, %s5
  %s8 = scalar_select 0, %s7, %s5
  loop: start=0, step=1, limit=4
  $region2: #{dense_layer_forward.2} parent=0 // loop_pre_header
    _
  $region3: #{dense_layer_forward.2} parent=0 // loop_header
    %s10 = sphi 0, %s14
    %p11 = scmp.ge.s32.totalorder %s10, 4
    %s17 = sphi 0, %s29
    %s18 = sphi 0, %s25
    %s19 = sphi 0, %s17
    %s20 = sphi 0, %s18
    %s21 = sphi 0, %s19
    %s22 = sphi 0, %s20
    %s34 = sphi 0, %s36
    %s37 = sphi 0, %s34
    %s38 = sphi 0, %s37
    %s54 = sphi 0, %s38
    %s58 = sphi 0, %s58
    %s60 = sphi 0, %s58
    %s61 = sphi 0, %s60
    %s75 = sphi 0, %s61
    %s79 = sphi 0, %s79
    %s81 = sphi 0, %s79
    %s82 = sphi 0, %s81
    %s96 = sphi 0, %s82
    %s100 = sphi 0, %s100
    %s102 = sphi 0, %s100
    %s103 = sphi 0, %s102
    %s117 = sphi 0, %s103
  $region4: #{dense_layer_forward.2} parent=0 // loop_header_branch
    %13 = sbr.rel (%p11) target = $region8
  $region5: #{dense_layer_forward.2} parent=0 // loop_body
    %s15 = ssub.s32 %s10, 1
    %s16 = ssub.s32 %s10, 2
    %s23 = sadd.s32 1, %s18
    %p24 = scmp.ge.s32.totalorder %s23, 1
    %s25 = scalar_select %p24, 0, %s23
    %s26 = sadd.s32 1, %s17
    %s27 = scalar_select %p24, %s26, %s17
    %p28 = scmp.ge.s32.totalorder %s27, 2
    %s29 = scalar_select %p28, 0, %s27
    %s30 = ssub.s32 %s17, %s29
    %s31 = ssub.s32 %s18, %s25
    %s32 = sor.u32 %s30, %s31
    %p33 = scmp.eq.s32.totalorder %s32, 0
    %s35 = sadd.s32 %s34, 1
    %s36 = scalar_select %p33, %s34, %s35
    %p39 = pneg %p33
    %p40 = scmp.eq.s32.totalorder %s10, 1
    %p41 = por %p39, %p40
    %p42 = scmp.ne.s32.totalorder %s34, %s37
    %p43 = scmp.eq.s32.totalorder %s10, 0
    %p44 = por %p42, %p43
    %p45 = scmp.ne.s32.totalorder %s34, %s37
    %p46 = scmp.eq.s32.totalorder %s15, 1
    %p47 = por %p45, %p46
    %p48 = scmp.ne.s32.totalorder %s37, %s38
    %p49 = scmp.eq.s32.totalorder %s15, 0
    %p50 = por %p48, %p49
    %p51 = scmp.ne.s32.totalorder %s37, %s38
    %p52 = scmp.eq.s32.totalorder %s16, 1
    %p53 = por %p51, %p52
    %p55 = scmp.ne.s32.totalorder %s38, %s54
    %p56 = scmp.eq.s32.totalorder %s16, 0
    %p57 = por %p55, %p56
    %s59 = sadd.s32 %s58, 1
    %p62 = scmp.eq.s32.totalorder %s10, 1
    %p63 = scmp.ne.s32.totalorder %s58, %s60
    %p64 = scmp.eq.s32.totalorder %s10, 0
    %p65 = por %p63, %p64
    %p66 = scmp.ne.s32.totalorder %s58, %s60
    %p67 = scmp.eq.s32.totalorder %s15, 1
    %p68 = por %p66, %p67
    %p69 = scmp.ne.s32.totalorder %s60, %s61
    %p70 = scmp.eq.s32.totalorder %s15, 0
    %p71 = por %p69, %p70
    %p72 = scmp.ne.s32.totalorder %s60, %s61
    %p73 = scmp.eq.s32.totalorder %s16, 1
    %p74 = por %p72, %p73
    %p76 = scmp.ne.s32.totalorder %s61, %s75
    %p77 = scmp.eq.s32.totalorder %s16, 0
    %p78 = por %p76, %p77
    %s80 = sadd.s32 %s79, 1
    %p83 = scmp.eq.s32.totalorder %s10, 1
    %p84 = scmp.ne.s32.totalorder %s79, %s81
    %p85 = scmp.eq.s32.totalorder %s10, 0
    %p86 = por %p84, %p85
    %p87 = scmp.ne.s32.totalorder %s79, %s81
    %p88 = scmp.eq.s32.totalorder %s15, 1
    %p89 = por %p87, %p88
    %p90 = scmp.ne.s32.totalorder %s81, %s82
    %p91 = scmp.eq.s32.totalorder %s15, 0
    %p92 = por %p90, %p91
    %p93 = scmp.ne.s32.totalorder %s81, %s82
    %p94 = scmp.eq.s32.totalorder %s16, 1
    %p95 = por %p93, %p94
    %p97 = scmp.ne.s32.totalorder %s82, %s96
    %p98 = scmp.eq.s32.totalorder %s16, 0
    %p99 = por %p97, %p98
    %s101 = sadd.s32 %s100, 1
    %p104 = scmp.eq.s32.totalorder %s10, 1
    %p105 = scmp.ne.s32.totalorder %s100, %s102
    %p106 = scmp.eq.s32.totalorder %s10, 0
    %p107 = por %p105, %p106
    %p108 = scmp.ne.s32.totalorder %s100, %s102
    %p109 = scmp.eq.s32.totalorder %s15, 1
    %p110 = por %p108, %p109
    %p111 = scmp.ne.s32.totalorder %s102, %s103
    %p112 = scmp.eq.s32.totalorder %s15, 0
    %p113 = por %p111, %p112
    %p114 = scmp.ne.s32.totalorder %s102, %s103
    %p115 = scmp.eq.s32.totalorder %s16, 1
    %p116 = por %p114, %p115
    %p118 = scmp.ne.s32.totalorder %s103, %s117
    %p119 = scmp.eq.s32.totalorder %s16, 0
    %p120 = por %p118, %p119
    %p121 = scmp.le.s32.totalorder 1, %s10
    %p122 = scmp.lt.s32.totalorder %s10, 3
    %p123 = pnand %p121, %p122
    %p124 = pneg %p123
    // Predicated region
    $region9: #{dense_layer_forward.2} parent=5 // pred_check
      _
    $region10: #{dense_layer_forward.2} parent=5 // pred_check_branch
      %126 = sbr.rel (%p123) target = $region12
    $region11: #{dense_layer_forward.2} parent=5 // pred_region
      %s127 = ssub.s32 %s10, 1
      // Predicated region
      $region13: #{dense_layer_forward.2} parent=11 // pred_check
        %p128 = pneg %p71
      $region14: #{dense_layer_forward.2} parent=11 // pred_check_branch
        %130 = sbr.rel (%p128) target = $region16
      $region15: #{dense_layer_forward.2} parent=11 // pred_region
        _
      $region16: #{dense_layer_forward.2} parent=11 // pred_fallthru
        _
    $region12: #{dense_layer_forward.2} parent=5 // pred_fallthru
      _
    %p131 = scmp.lt.s32.totalorder %s10, 2
    // Predicated region
    $region17: #{dense_layer_forward.2} parent=5 // pred_check
      %p132 = pneg %p131
    $region18: #{dense_layer_forward.2} parent=5 // pred_check_branch
      %134 = sbr.rel (%p132) target = $region20
    $region19: #{dense_layer_forward.2} parent=5 // pred_region
      // Predicated region
      $region21: #{dense_layer_forward.2} parent=19 // pred_check
        %p135 = pneg %p44
      $region22: #{dense_layer_forward.2} parent=19 // pred_check_branch
        %137 = sbr.rel (%p135) target = $region24
      $region23: #{dense_layer_forward.2} parent=19 // pred_region
        %p138 = scmp.lt.s32.totalorder %s17, 1
        %s139 = scalar_select %p138, %s17, 1
        %p140 = scmp.lt.s32.totalorder %s18, 0
        %s141 = scalar_select %p140, %s18, 0
        %s142 = sadd.s32 %s141, %s139
        %s143 = smul.addr %s142, 4
        %s144 = scalar_lea.vmem %s0, %s143
      $region24: #{dense_layer_forward.2} parent=19 // pred_fallthru
        _
    $region20: #{dense_layer_forward.2} parent=5 // pred_fallthru
      _
    %p145 = scmp.le.s32.totalorder 1, %s10
    %p146 = scmp.lt.s32.totalorder %s10, 3
    %p147 = pnand %p145, %p146
    %p148 = pneg %p147
    // Predicated region
    $region25: #{dense_layer_forward.2} parent=5 // pred_check
      _
    $region26: #{dense_layer_forward.2} parent=5 // pred_check_branch
      %150 = sbr.rel (%p147) target = $region28
    $region27: #{dense_layer_forward.2} parent=5 // pred_region
      %s151 = ssub.s32 %s10, 1
      %p152 = scmp.lt.s32.totalorder %s19, 1
      %s153 = scalar_select %p152, %s19, 1
      %p154 = scmp.lt.s32.totalorder %s20, 0
      %s155 = scalar_select %p154, %s20, 0
      %s156 = sadd.s32 %s155, %s153
      %s157 = smul.addr %s156, 4
      %s158 = scalar_lea.vmem %s0, %s157
      %p159 = pneg %p50
      %p160 = pneg %p47
      %p161 = pneg %p71
      %p162 = pneg %p68
      %p163 = pneg %p92
      %p164 = pneg %p89
      %p165 = pneg %p113
      %p166 = pneg %p110
      %p167 = scmp.lt.s32.totalorder %s19, 1
      %s168 = scalar_select %p167, %s19, 1
      %p169 = scmp.lt.s32.totalorder %s20, 0
      %s170 = scalar_select %p169, %s20, 0
      %s171 = sadd.s32 %s170, %s168
      %s172 = smul.addr %s171, 4
      %s173 = scalar_lea.vmem %s0, %s172
      %p174 = scmp.eq.s32.totalorder %s19, 0
      %p175 = scmp.eq.s32.totalorder %s20, 0
      %p176 = pnand %p174, %p175
      %p177 = pneg %p176
      // Predicated region
      $region29: #{dense_layer_forward.2} parent=27 // pred_check
        _
      $region30: #{dense_layer_forward.2} parent=27 // pred_check_branch
        %179 = sbr.rel (%p176) target = $region32
      $region31: #{dense_layer_forward.2} parent=27 // pred_region
        %vm180 = vcmask 7168
        %181 = vst.msk [vmem:[#allocation2] sm:$0xff] %vm180, 0.0
        %182 = vst.msk [vmem:[#allocation3] sm:$0xff] %vm180, 0.0
      $region32: #{dense_layer_forward.2} parent=27 // pred_fallthru
        _
      %v183 = vld [vmem:[%s1] sm:$0xff]
      %v184 = vld [vmem:[%s173] sm:$0xf]
      %vm185 = vcmask 31744
      %v187 = vsel %vm185, %v183, 0
      %vm189 = vcmask 1043456
      %v191 = vsel %vm189, %v184, 0
      %193 = vmatpush.msra.mxu0 0.0
      %194 = vmatpush.msra.mxu0 0.0
      %195 = vmatpush.msra.mxu0 0.0
      %196 = vmatpush.msra.mxu0 0.0
      %197 = vmatpush.msra.mxu0 0.0
      %198 = vmatpush.msra.mxu0 0.0
      %199 = vmatpush.msra.mxu0 0.0
      %200 = vmatpush.msra.mxu0 0.0
      %201 = vmatpush.msra.mxu0 0.0
      %202 = vmatpush.msra.mxu0 0.0
      %203 = vmatpush.msra.mxu0 0.0
      %204 = vmatpush.msra.mxu0 0.0
      %205 = vmatpush.msra.mxu0 0.0
      %206 = vmatpush.msra.mxu0 0.0
      %207 = vmatpush.msra.mxu0 0.0
      %208 = vmatpush.msra.mxu0 %v191
      %209 = vmatmul.f32.gmra.mxu0 %v187
      %v210 = vpop.f32.mrf.mxu0
      %v211 = vadd.f32 0.0, %v210
      %212 = vdwg.mxu0
      %v213 = vld [vmem:[#allocation2] sm:$0xff]
      %vm214 = vcmask 130048
      %v215 = vsel %vm214, %v211, 0.0
      %216 = vadd.xlane.f32.xlu0 %v215
      %v217 = vpop.xlane.xlu0 %216
      %v218 = vadd.f32 %v213, %v217
      %vm219 = vcmask 7168
      %220 = vst.msk [vmem:[#allocation2] sm:$0xff] %vm219, %v218
      %v221 = vld [vmem:[#allocation3] sm:$0xff]
      %v222 = vmul.f32 %v211, %v211
      %v223 = vsel %vm214, %v222, 0.0
      %224 = vadd.xlane.f32.xlu0 %v223
      %v225 = vpop.xlane.xlu0 %224
      %v226 = vadd.f32 %v221, %v225
      %227 = vst.msk [vmem:[#allocation3] sm:$0xff] %vm219, %v226
      %p228 = scmp.eq.s32.totalorder %s19, 1
      %p229 = pnand %p228, %p175
      %p230 = pneg %p229
      // Predicated region
      $region33: #{dense_layer_forward.2} parent=27 // pred_check
        _
      $region34: #{dense_layer_forward.2} parent=27 // pred_check_branch
        %232 = sbr.rel (%p229) target = $region36
      $region35: #{dense_layer_forward.2} parent=27 // pred_region
        %v233 = vld [vmem:[#allocation2] sm:$0xff]
        %v234 = vmul.f32 %v233, 0.03125
        %v235 = vld [vmem:[#allocation3] sm:$0xff]
        %v236 = vmul.f32 %v235, 0.03125
        %v237 = vmul.f32 %v234, %v234
        %v238 = vsub.f32 %v236, %v237
        %v239 = vmax.f32 %v238, 0.0
        %240 = vst.msk [vmem:[%s2] sm:$0xff] %vm219, %v234
        %v241 = vadd.f32 %v239, 1e-05
        %v242 = vrsqrt.pop %v241
        %v243 = vmul.f32 %v242, %v241
        %v244 = vmul.f32 %v243, %v242
        %v245 = vmul.f32 0.5, %v244
        %v246 = vsub.f32 1.5, %v245
        %v247 = vmul.f32 %v242, %v246
        %vm248 = vweird.f32 %v241
        %vm249 = vweird.f32 %v242
        %vm250 = vmor %vm248, %vm249
        %v251 = vsel %vm250, %v242, %v247
        %252 = vst.msk [vmem:[%s3] sm:$0xff] %vm219, %v251
      $region36: #{dense_layer_forward.2} parent=27 // pred_fallthru
        _
      // Predicated region
      $region37: #{dense_layer_forward.2} parent=27 // pred_check
        %p253 = pneg %p89
      $region38: #{dense_layer_forward.2} parent=27 // pred_check_branch
        %255 = sbr.rel (%p253) target = $region40
      $region39: #{dense_layer_forward.2} parent=27 // pred_region
        _
      $region40: #{dense_layer_forward.2} parent=27 // pred_fallthru
        _
      // Predicated region
      $region41: #{dense_layer_forward.2} parent=27 // pred_check
        %p256 = pneg %p110
      $region42: #{dense_layer_forward.2} parent=27 // pred_check_branch
        %258 = sbr.rel (%p256) target = $region44
      $region43: #{dense_layer_forward.2} parent=27 // pred_region
        _
      $region44: #{dense_layer_forward.2} parent=27 // pred_fallthru
        _
      // Predicated region
      $region45: #{dense_layer_forward.2} parent=27 // pred_check
        %p259 = pneg %p89
      $region46: #{dense_layer_forward.2} parent=27 // pred_check_branch
        %261 = sbr.rel (%p259) target = $region48
      $region47: #{dense_layer_forward.2} parent=27 // pred_region
        _
      $region48: #{dense_layer_forward.2} parent=27 // pred_fallthru
        _
      // Predicated region
      $region49: #{dense_layer_forward.2} parent=27 // pred_check
        %p262 = pneg %p110
      $region50: #{dense_layer_forward.2} parent=27 // pred_check_branch
        %264 = sbr.rel (%p262) target = $region52
      $region51: #{dense_layer_forward.2} parent=27 // pred_region
        _
      $region52: #{dense_layer_forward.2} parent=27 // pred_fallthru
        _
    $region28: #{dense_layer_forward.2} parent=5 // pred_fallthru
      _
    %p265 = scmp.le.s32.totalorder 2, %s10
    // Predicated region
    $region53: #{dense_layer_forward.2} parent=5 // pred_check
      %p266 = pneg %p265
    $region54: #{dense_layer_forward.2} parent=5 // pred_check_branch
      %268 = sbr.rel (%p266) target = $region56
    $region55: #{dense_layer_forward.2} parent=5 // pred_region
      %s269 = ssub.s32 %s10, 2
    $region56: #{dense_layer_forward.2} parent=5 // pred_fallthru
      _
  $region6: #{dense_layer_forward.2} parent=0 // loop_footer
    %s14 = sadd.s32 1, %s10
  $region7: #{dense_layer_forward.2} parent=0 // loop_footer_branch
    %9 = sbr.rel target = $region3
  $region8: #{dense_layer_forward.2} parent=0 // loop_exit
    _

</llo_original>
